<compile_context>
chip_gen: v7x
topology: tpu7x:2x2x1
jax: 0.10.0
libtpu: 0.0.40
codegen_flags: <defaults>
</compile_context>

<pallas_src>
import functools

import jax
import jax.numpy as jnp
from jax.experimental import pallas as pl
from jax.experimental.pallas import tpu as pltpu


def _round_up(x, m):
    return ((x + m - 1) // m) * m


def _cdiv(a, b):
    return -(-a // b)


def _tpu_generation():
    try:
        kind = jax.devices()[0].device_kind.lower()
    except Exception:
        return "unknown"
    if "v7" in kind or "7x" in kind:
        return "v7x"
    if "v6" in kind:
        return "v6e"
    if "v5" in kind:
        return "v5"
    return "other"


def _swiglu_kernel(x_ref, w12_ref, b12_ref, w3_ref, b3_ref, o_ref, *scratch,
                   tile_h, n_h):
    """One (token tile, hidden tile) grid step.

    x12 = x @ [W1|W2][:, h] + [b1|b2][h]      (single fused MXU pass)
    hidden = silu(x12[:, :tile_h]) * x12[:, tile_h:]
    partial = hidden @ W3[h, :]
    accumulate partials over h; add b3 exactly once at finalize.
    """
    h = pl.program_id(1)

    x = x_ref[...]
    # Fused gate/value projection: one matmul per hidden step, f32 accumulate.
    x12 = jnp.dot(x, w12_ref[...], preferred_element_type=jnp.float32)
    x12 = x12 + b12_ref[...].astype(jnp.float32)

    # Static split of the fused halves (lane-aligned when tile_h % 128 == 0).
    x1 = x12[:, :tile_h]
    x2 = x12[:, tile_h:]

    # SiLU gate in f32 (v5e VPU/EUP have no bf16 elementwise path).
    hidden = (x1 * jax.nn.sigmoid(x1)) * x2

    # Down projection: narrow MXU operands when weights are bf16, f32 accum.
    partial = jnp.dot(hidden.astype(w3_ref.dtype), w3_ref[...],
                      preferred_element_type=jnp.float32)

    if n_h == 1:
        # Weights VMEM-resident; no accumulator round-trip needed at all.
        o_ref[...] = (partial + b3_ref[...].astype(jnp.float32)
                      ).astype(o_ref.dtype)
    else:
        acc_ref = scratch[0]

        @pl.when(h == 0)
        def _():
            # Direct write: no separate zero-init store.
            acc_ref[...] = partial

        @pl.when(jnp.logical_and(h > 0, h < n_h - 1))
        def _():
            acc_ref[...] += partial

        @pl.when(h == n_h - 1)
        def _():
            # Keep the last partial in registers: saves one acc store+reload.
            o_ref[...] = (acc_ref[...] + partial
                          + b3_ref[...].astype(jnp.float32)).astype(o_ref.dtype)


def swiglu_pallas(x, w1, b1, w2, b2, w3, b3, *, tile_m=None, tile_h=None,
                  vmem_limit_bytes=None):
    """x: (B, N, D_in). Weights are (in, out) layout; biases are (out,)."""
    B, N, D_in = x.shape
    H = w1.shape[1]
    D_out = w3.shape[1]
    M = B * N

    x2d = x.reshape(M, D_in)

    # ---- generation-specific defaults (token tile / hidden tile / VMEM cap) ----
    gen = _tpu_generation()
    tile_m_target, tile_h_target, vmem_default = {
        "v6e": (1024, 512, 100 * 1024 * 1024),   # 128 MiB physical
        "v7x": (512, 256, 52 * 1024 * 1024),     # 64 MiB physical
        "v5":  (256, 512, 48 * 1024 * 1024),     # roofline-balanced already
    }.get(gen, (256, 512, 48 * 1024 * 1024))
    if vmem_limit_bytes is None:
        vmem_limit_bytes = vmem_default

    x_it = jnp.dtype(x.dtype).itemsize
    w_it = jnp.dtype(w1.dtype).itemsize
    o_it = x_it
    sublane = max(8, 32 // x_it)   # 8 (f32) / 16 (bf16) / 32 (int8/fp8)

    # ---- token tile ----
    if tile_m is None:
        tile_m = tile_m_target if M >= tile_m_target else _round_up(M, sublane)
        if gen == "v7x" and M > sublane and _cdiv(M, tile_m) < 2:
            # 2 TensorCores/chip: prefer >=2 token tiles so the "parallel"
            # grid axis shards across both cores.
            tile_m = max(sublane, _round_up(_cdiv(M, 2), sublane))
    tile_m = _round_up(tile_m, sublane)

    # ---- VMEM budget model (double-buffered pipeline blocks + temporaries) ----
    def vmem_bytes(tm, th, nh):
        b = 2 * tm * D_in * x_it                 # x blocks
        b += 2 * D_in * (2 * th) * w_it          # [W1|W2] blocks
        b += 2 * th * D_out * w_it               # W3 blocks
        b += 2 * (2 * th + D_out) * 4            # biases (negligible)
        b += 2 * tm * D_out * o_it               # out blocks
        if nh > 1:
            b += tm * D_out * 4                  # f32 accumulator scratch
        b += 3 * tm * th * 4                     # x12 / hidden f32 temporaries
        return b

    budget = int(0.85 * vmem_limit_bytes)

    # ---- hidden tile: resident weights when they fit, else lane-aligned tiles ----
    if tile_h is None:
        if vmem_bytes(tile_m, H, 1) <= budget:
            tile_h = H   # resident: constant weight index -> DMA'd once total
        else:
            for cand in sorted({tile_h_target, 512, 256, 128}, reverse=True):
                if cand < H and H % cand == 0:
                    tile_h = cand
                    break
            else:
                # TODO(synk): pad H to a multiple of 128 for odd hidden sizes.
                tile_h = H
            # Shrink the token tile if the config still over-budgets VMEM.
            while (vmem_bytes(tile_m, tile_h, _cdiv(H, tile_h)) > budget
                   and tile_m > 256):
                tile_m = max(256, _round_up(tile_m // 2, sublane))
    assert H % tile_h == 0, "tile_h must divide hidden_features"
    n_h = H // tile_h
    n_m = _cdiv(M, tile_m)
    grid = (n_m, n_h)

    # ---- fused [W1|W2] weights, interleaved per hidden tile ----
    # (In a real model this re-layout is done once at parameter load time.)
    if n_h == 1:
        w12 = jnp.concatenate([w1, w2], axis=1)
        b12 = jnp.concatenate([b1, b2]).reshape(1, 2 * H)
    else:
        w12 = jnp.concatenate(
            [w1.reshape(D_in, n_h, tile_h), w2.reshape(D_in, n_h, tile_h)],
            axis=2).reshape(D_in, 2 * H)
        b12 = jnp.concatenate(
            [b1.reshape(n_h, tile_h), b2.reshape(n_h, tile_h)],
            axis=1).reshape(1, 2 * H)
    b3_2d = b3.reshape(1, D_out)

    # ---- cost estimate (weights re-fetched per token tile unless resident) ----
    weight_fetches = 1 if n_h == 1 else n_m
    b_it = jnp.dtype(b1.dtype).itemsize
    cost = pl.CostEstimate(
        flops=2 * M * D_in * (2 * H) + 2 * M * H * D_out,
        transcendentals=M * H,   # sigmoid
        bytes_accessed=(n_m * tile_m * D_in * x_it
                        + weight_fetches * (w12.size + w3.size) * w_it
                        + weight_fetches * (b12.size + b3_2d.size) * b_it
                        + n_m * tile_m * D_out * o_it),
    )

    kernel = functools.partial(_swiglu_kernel, tile_h=tile_h, n_h=n_h)
    scratch_shapes = ([pltpu.VMEM((tile_m, D_out), jnp.float32)]
                      if n_h > 1 else [])

    out2d = pl.pallas_call(
        kernel,
        out_shape=jax.ShapeDtypeStruct((M, D_out), x.dtype),
        grid_spec=pltpu.PrefetchScalarGridSpec(
            num_scalar_prefetch=0,
            grid=grid,
            in_specs=[
                pl.BlockSpec((tile_m, D_in), lambda i, h: (i, 0)),      # x rows
                pl.BlockSpec((D_in, 2 * tile_h), lambda i, h: (0, h)),  # [W1|W2]
                pl.BlockSpec((1, 2 * tile_h), lambda i, h: (0, h)),     # [b1|b2]
                pl.BlockSpec((tile_h, D_out), lambda i, h: (h, 0)),     # W3 rows
                pl.BlockSpec((1, D_out), lambda i, h: (0, 0)),          # b3
            ],
            out_specs=pl.BlockSpec((tile_m, D_out), lambda i, h: (i, 0)),
            scratch_shapes=scratch_shapes,
        ),
        compiler_params=pltpu.CompilerParams(
            dimension_semantics=("parallel", "arbitrary"),
            vmem_limit_bytes=vmem_limit_bytes,
        ),
        cost_estimate=cost,
    )(x2d, w12, b12, w3, b3_2d)

    return out2d.reshape(B, N, D_out)


def swiglu_reference(x, w1, b1, w2, b2, w3, b3):
    x1 = x @ w1 + b1
    x2 = x @ w2 + b2
    hidden = jax.nn.silu(x1) * x2
    return hidden @ w3 + b3


if __name__ == "__main__":
    # Small shapes consistent with SwiGLU(in_features=32): hidden/out default
    # to in_features.
    B, N, D_in = 2, 8, 32
    H = 32
    D_out = 32

    key = jax.random.PRNGKey(0)
    kx, k1, kb1, k2, kb2, k3, kb3 = jax.random.split(key, 7)

    x = jax.random.normal(kx, (B, N, D_in), dtype=jnp.float32)

    # PyTorch nn.Linear weight is (out, in); we store the transposed (in, out)
    # layout used by the kernel.
    w1 = jax.random.normal(k1, (D_in, H), dtype=jnp.float32) * 0.05
    b1 = jax.random.normal(kb1, (H,), dtype=jnp.float32) * 0.05
    w2 = jax.random.normal(k2, (D_in, H), dtype=jnp.float32) * 0.05
    b2 = jax.random.normal(kb2, (H,), dtype=jnp.float32) * 0.05
    w3 = jax.random.normal(k3, (H, D_out), dtype=jnp.float32) * 0.05
    b3 = jax.random.normal(kb3, (D_out,), dtype=jnp.float32) * 0.05

    out = swiglu_pallas(x, w1, b1, w2, b2, w3, b3)
    out = jax.block_until_ready(out)

    ref = swiglu_reference(x, w1, b1, w2, b2, w3, b3)
    assert out.shape == (B, N, D_out)
    assert jnp.allclose(out, ref, atol=1e-5, rtol=1e-5), "mismatch vs reference"

    print("KERNEL_OK")
</pallas_src>

<mosaic_0001>
module attributes {stable_mosaic.version = 11 : i64} {
  func.func @_swiglu_kernel(%arg0: i32, %arg1: i32, %arg2: memref<16x32xf32, #tpu.memory_space<vmem>>, %arg3: memref<32x64xf32, #tpu.memory_space<vmem>>, %arg4: memref<1x64xf32, #tpu.memory_space<vmem>>, %arg5: memref<32x32xf32, #tpu.memory_space<vmem>>, %arg6: memref<1x32xf32, #tpu.memory_space<vmem>>, %arg7: memref<16x32xf32, #tpu.memory_space<vmem>>) attributes {dimension_semantics = [#tpu.dimension_semantics<parallel>, #tpu.dimension_semantics<arbitrary>], iteration_bounds = array<i64: 1, 1>, scalar_prefetch = 0 : i64, scratch_operands = 0 : i64, tpu.core_type = #tpu.core_type<tc>, window_params = [{transform_indices = @transform_0, window_bounds = array<i64: 16, 32>}, {transform_indices = @transform_1, window_bounds = array<i64: 32, 64>}, {transform_indices = @transform_2, window_bounds = array<i64: 1, 64>}, {transform_indices = @transform_3, window_bounds = array<i64: 32, 32>}, {pipeline_mode = #tpu.pipeline_mode<synchronous>, transform_indices = @transform_4, window_bounds = array<i64: 1, 32>}, {transform_indices = @transform_5, window_bounds = array<i64: 16, 32>}]} {
    %c0 = arith.constant 0 : index
    %c0_0 = arith.constant 0 : index
    %0 = vector.load %arg2[%c0, %c0_0] : memref<16x32xf32, #tpu.memory_space<vmem>>, vector<16x32xf32>
    %c0_1 = arith.constant 0 : index
    %c0_2 = arith.constant 0 : index
    %1 = vector.load %arg3[%c0_1, %c0_2] : memref<32x64xf32, #tpu.memory_space<vmem>>, vector<32x64xf32>
    %cst = arith.constant dense<0.000000e+00> : vector<16x64xf32>
    %2 = tpu.matmul %0, %1, %cst {dimension_numbers = #tpu.dot_dimension_numbers<[1], [0], [0], [1], [0, 0, 1, 1], [], []>} : vector<16x32xf32>, vector<32x64xf32>, vector<16x64xf32> -> vector<16x64xf32>
    %c0_3 = arith.constant 0 : index
    %c0_4 = arith.constant 0 : index
    %3 = vector.load %arg4[%c0_3, %c0_4] : memref<1x64xf32, #tpu.memory_space<vmem>>, vector<1x64xf32>
    %4 = vector.broadcast %3 : vector<1x64xf32> to vector<16x64xf32>
    %5 = arith.addf %2, %4 : vector<16x64xf32>
    %6 = vector.extract_strided_slice %5 {offsets = [0, 0], sizes = [16, 32], strides = [1, 1]} : vector<16x64xf32> to vector<16x32xf32>
    %7 = vector.extract_strided_slice %5 {offsets = [0, 32], sizes = [16, 32], strides = [1, 1]} : vector<16x64xf32> to vector<16x32xf32>
    %8 = arith.negf %6 : vector<16x32xf32>
    %9 = math.exp %8 : vector<16x32xf32>
    %cst_5 = arith.constant 1.000000e+00 : f32
    %10 = vector.broadcast %cst_5 : f32 to vector<16x32xf32>
    %11 = arith.addf %10, %9 : vector<16x32xf32>
    %12 = arith.divf %10, %11 : vector<16x32xf32>
    %13 = arith.mulf %6, %12 : vector<16x32xf32>
    %14 = arith.mulf %13, %7 : vector<16x32xf32>
    %c0_6 = arith.constant 0 : index
    %c0_7 = arith.constant 0 : index
    %15 = vector.load %arg5[%c0_6, %c0_7] : memref<32x32xf32, #tpu.memory_space<vmem>>, vector<32x32xf32>
    %cst_8 = arith.constant dense<0.000000e+00> : vector<16x32xf32>
    %16 = tpu.matmul %14, %15, %cst_8 {dimension_numbers = #tpu.dot_dimension_numbers<[1], [0], [0], [1], [0, 0, 1, 1], [], []>} : vector<16x32xf32>, vector<32x32xf32>, vector<16x32xf32> -> vector<16x32xf32>
    %c0_9 = arith.constant 0 : index
    %c0_10 = arith.constant 0 : index
    %17 = vector.load %arg6[%c0_9, %c0_10] : memref<1x32xf32, #tpu.memory_space<vmem>>, vector<1x32xf32>
    %18 = vector.broadcast %17 : vector<1x32xf32> to vector<16x32xf32>
    %19 = arith.addf %16, %18 : vector<16x32xf32>
    %c0_11 = arith.constant 0 : index
    %c0_12 = arith.constant 0 : index
    %20 = vector.load %arg7[%c0_11, %c0_12] : memref<16x32xf32, #tpu.memory_space<vmem>>, vector<16x32xf32>
    tpu.vector_store %arg7[%c0_11, %c0_12], %19 {strides = array<i32>} : memref<16x32xf32, #tpu.memory_space<vmem>>, vector<16x32xf32>,
    return
  }
  func.func @transform_0(%arg0: i32, %arg1: i32) -> (i32, i32) {
    %c0_i32 = arith.constant 0 : i32
    %c0_i32_0 = arith.constant 0 : i32
    return %arg0, %c0_i32 : i32, i32
  }
  func.func @transform_1(%arg0: i32, %arg1: i32) -> (i32, i32) {
    %c0_i32 = arith.constant 0 : i32
    %c0_i32_0 = arith.constant 0 : i32
    return %c0_i32, %arg1 : i32, i32
  }
  func.func @transform_2(%arg0: i32, %arg1: i32) -> (i32, i32) {
    %c0_i32 = arith.constant 0 : i32
    %c0_i32_0 = arith.constant 0 : i32
    return %c0_i32, %arg1 : i32, i32
  }
  func.func @transform_3(%arg0: i32, %arg1: i32) -> (i32, i32) {
    %c0_i32 = arith.constant 0 : i32
    %c0_i32_0 = arith.constant 0 : i32
    return %arg1, %c0_i32 : i32, i32
  }
  func.func @transform_4(%arg0: i32, %arg1: i32) -> (i32, i32) {
    %c0_i32 = arith.constant 0 : i32
    %c0_i32_0 = arith.constant 0 : i32
    %c0_i32_1 = arith.constant 0 : i32
    return %c0_i32, %c0_i32_0 : i32, i32
  }
  func.func @transform_5(%arg0: i32, %arg1: i32) -> (i32, i32) {
    %c0_i32 = arith.constant 0 : i32
    %c0_i32_0 = arith.constant 0 : i32
    return %arg0, %c0_i32 : i32, i32
  }
}

</mosaic_0001>

<llo_original>
// kernel: tpu_custom_call.1
$region0: #{tpu_custom_call.1}
  #allocation0 [shape = 'u32[]', space=smem, size = 0x4, offset = 0x4, fixed_abs, tag = 'smem constant byte address 0x4 - core index']
  #allocation1 [shape = 'u32[144,128]{1,0:T(1,128)}', space=vmem, size = 0x12000, scoped, tag = 'internal scratch']
  %s0 = inlined_call_operand.hbm [shape: f32[16,32], index: 0, kind: input, shape index: {}]
  %s1 = inlined_call_operand.hbm [shape: f32[32,64], index: 1, kind: input, shape index: {}]
  %s2 = inlined_call_operand.vmem [shape: f32[1,64], index: 2, kind: input, shape index: {}]
  %s3 = inlined_call_operand.hbm [shape: f32[32,32], index: 3, kind: input, shape index: {}]
  %s4 = inlined_call_operand.vmem [shape: f32[1,32], index: 4, kind: input, shape index: {}]
  %s5 = inlined_call_operand.hbm [shape: f32[16,32], index: 5, kind: output, shape index: {}]
  %s6 = sld [smem:[#allocation0]]
  $region42: #{tpu_custom_call.1} parent=0
    _
  %s8 = ssub.s32 1, %s6
  %s9 = scalar_select 0, %s8, %s6
  $region1: #{tpu_custom_call.1} parent=0
    #allocation2 [shape = 'u8[8192]{0}', space=vmem, size = 0x2000, scoped, tag = 'input window, operand 0, single buffered']
    #allocation3 [shape = 's32[1]{0}', space=sflag, size = 0x4, scoped, tag = 'scoped memory for tpu_custom_call.1']
    #allocation4 [shape = 's32[1]{0}', space=sflag, size = 0x4, scoped, tag = 'scoped memory for tpu_custom_call.1']
    #allocation5 [shape = 'u8[16384]{0}', space=vmem, size = 0x4000, scoped, tag = 'input window, operand 1, single buffered']
    #allocation6 [shape = 's32[1]{0}', space=sflag, size = 0x4, scoped, tag = 'scoped memory for tpu_custom_call.1']
    #allocation7 [shape = 'u8[16384]{0}', space=vmem, size = 0x4000, scoped, tag = 'input window, operand 3, single buffered']
    #allocation8 [shape = 'u8[8192]{0}', space=vmem, size = 0x2000, scoped, tag = 'output window, operand 0, single buffered']
    %10 = vsyncpa [#allocation3], 0
    %11 = vsyncpa [#allocation6], 0
    %12 = vsyncpa [#allocation4], 0
    // Predicated region
    $region2: #{tpu_custom_call.1} parent=1 // pred_check
      _
    $region3: #{tpu_custom_call.1} parent=1 // pred_check_branch
      %14 = sbr.rel (0) target = $region5
    $region4: #{tpu_custom_call.1} parent=1 // pred_region
      %s16 = ssub.s32 256, 256
      %17 = vsyncadd [#allocation3], %s16
      %s18 = sshll.u32 [#allocation2], 4
      %s19 = int_to_ptr.vmem [resolvable:$true] %s18
      %24 = dma.hbm_to_vmem [thread:$0]  %s0, 256, %s19, [#allocation3], 128, 128, 8
    $region5: #{tpu_custom_call.1} parent=1 // pred_fallthru
      _
    // Predicated region
    $region6: #{tpu_custom_call.1} parent=1 // pred_check
      _
    $region7: #{tpu_custom_call.1} parent=1 // pred_check_branch
      %26 = sbr.rel (0) target = $region9
    $region8: #{tpu_custom_call.1} parent=1 // pred_region
      %s28 = ssub.s32 512, 512
      %29 = vsyncadd [#allocation6], %s28
      %s30 = sshll.u32 [#allocation5], 4
      %s31 = int_to_ptr.vmem [resolvable:$true] %s30
      %36 = dma.hbm_to_vmem [thread:$0]  %s1, 512, %s31, [#allocation6], 128, 128, 8
    $region9: #{tpu_custom_call.1} parent=1 // pred_fallthru
      _
    // Predicated region
    $region10: #{tpu_custom_call.1} parent=1 // pred_check
      _
    $region11: #{tpu_custom_call.1} parent=1 // pred_check_branch
      %38 = sbr.rel (0) target = $region13
    $region12: #{tpu_custom_call.1} parent=1 // pred_region
      _
    $region13: #{tpu_custom_call.1} parent=1 // pred_fallthru
      _
    // Predicated region
    $region14: #{tpu_custom_call.1} parent=1 // pred_check
      _
    $region15: #{tpu_custom_call.1} parent=1 // pred_check_branch
      %40 = sbr.rel (0) target = $region17
    $region16: #{tpu_custom_call.1} parent=1 // pred_region
      %s42 = ssub.s32 512, 512
      %43 = vsyncadd [#allocation6], %s42
      %s44 = sshll.u32 [#allocation7], 4
      %s45 = int_to_ptr.vmem [resolvable:$true] %s44
      %50 = dma.hbm_to_vmem [thread:$0]  %s3, 512, %s45, [#allocation6], 128, 128, 8
    $region17: #{tpu_custom_call.1} parent=1 // pred_fallthru
      _
    // Predicated region
    $region18: #{tpu_custom_call.1} parent=1 // pred_check
      _
    $region19: #{tpu_custom_call.1} parent=1 // pred_check_branch
      %52 = sbr.rel (0) target = $region21
    $region20: #{tpu_custom_call.1} parent=1 // pred_region
      _
    $region21: #{tpu_custom_call.1} parent=1 // pred_fallthru
      _
    // Predicated region
    $region22: #{tpu_custom_call.1} parent=1 // pred_check
      _
    $region23: #{tpu_custom_call.1} parent=1 // pred_check_branch
      %54 = sbr.rel (0) target = $region25
    $region24: #{tpu_custom_call.1} parent=1 // pred_region
      %55 = dma.done [#allocation3], 256
    $region25: #{tpu_custom_call.1} parent=1 // pred_fallthru
      _
    // Predicated region
    $region26: #{tpu_custom_call.1} parent=1 // pred_check
      _
    $region27: #{tpu_custom_call.1} parent=1 // pred_check_branch
      %57 = sbr.rel (0) target = $region29
    $region28: #{tpu_custom_call.1} parent=1 // pred_region
      %58 = dma.done [#allocation6], 512
    $region29: #{tpu_custom_call.1} parent=1 // pred_fallthru
      _
    // Predicated region
    $region30: #{tpu_custom_call.1} parent=1 // pred_check
      _
    $region31: #{tpu_custom_call.1} parent=1 // pred_check_branch
      %60 = sbr.rel (0) target = $region33
    $region32: #{tpu_custom_call.1} parent=1 // pred_region
      %61 = dma.done [#allocation6], 512
    $region33: #{tpu_custom_call.1} parent=1 // pred_fallthru
      _
    %v62 = vld [vmem:[#allocation2] sm:$0xff]
    %v63 = vld [vmem:[#allocation2 + $0x8] sm:$0xff]
    %v64 = vld [vmem:[#allocation5] sm:$0xff]
    %v65 = vld [vmem:[#allocation5 + $0x8] sm:$0xff]
    %v66 = vld [vmem:[#allocation5 + $0x10] sm:$0xff]
    %v67 = vld [vmem:[#allocation5 + $0x18] sm:$0xff]
    %v68 = vld [vmem:[%s2] sm:$0x1]
    %v70 = vlaneseq
    %v71 = vshrl.u32 %v70, 7
    %v72 = vsub.s32 0, %v71
    %v73 = vrot.slane %v68, %v72
    %vm75 = vcmask 261120
    %v77 = vsel %vm75, %v62, 0
    %v80 = vsel %vm75, %v63, 0
    %82 = vmatprep.subr.mxu0 0.0
    %83 = vmatpush1.msra.mxu0 %v64
    %84 = vmatprep.subr.mxu0 0.0
    %85 = vmatpush1.msra.mxu0 %v65
    %86 = vmatprep.subr.mxu0 0.0
    %87 = vmatpush1.msra.mxu0 %v66
    %88 = vmatprep.subr.mxu0 0.0
    %89 = vmatpush1.msra.mxu0 %v67
    %90 = vmatprep.subr.mxu0 0.0
    %91 = vmatpush1.msra.mxu0 0.0
    %92 = vmatprep.subr.mxu0 0.0
    %93 = vmatpush1.msra.mxu0 0.0
    %94 = vmatprep.subr.mxu0 0.0
    %95 = vmatpush1.msra.mxu0 0.0
    %96 = vmatprep.subr.mxu0 0.0
    %97 = vmatpush1.msra.mxu0 0.0
    %98 = vmatprep.subr.mxu0 0.0
    %99 = vmatpush1.msra.mxu0 0.0
    %100 = vmatprep.subr.mxu0 0.0
    %101 = vmatpush1.msra.mxu0 0.0
    %102 = vmatprep.subr.mxu0 0.0
    %103 = vmatpush1.msra.mxu0 0.0
    %104 = vmatprep.subr.mxu0 0.0
    %105 = vmatpush1.msra.mxu0 0.0
    %106 = vmatprep.subr.mxu0 0.0
    %107 = vmatpush1.msra.mxu0 0.0
    %108 = vmatprep.subr.mxu0 0.0
    %109 = vmatpush1.msra.mxu0 0.0
    %110 = vmatprep.subr.mxu0 0.0
    %111 = vmatpush1.msra.mxu0 0.0
    %112 = vmatprep.subr.mxu0 0.0
    %113 = vmatpush1.msra.mxu0 0.0
    %114 = vmatprep.subr.mxu0 0.0
    %115 = vmatpush1.msra.mxu0 0.0
    %116 = vmatprep.subr.mxu0 0.0
    %117 = vmatpush1.msra.mxu0 0.0
    %118 = vmatprep.subr.mxu0 0.0
    %119 = vmatpush1.msra.mxu0 0.0
    %120 = vmatprep.subr.mxu0 0.0
    %121 = vmatpush1.msra.mxu0 0.0
    %122 = vmatprep.subr.mxu0 0.0
    %123 = vmatpush1.msra.mxu0 0.0
    %124 = vmatprep.subr.mxu0 0.0
    %125 = vmatpush1.msra.mxu0 0.0
    %126 = vmatprep.subr.mxu0 0.0
    %127 = vmatpush1.msra.mxu0 0.0
    %128 = vmatprep.subr.mxu0 0.0
    %129 = vmatpush1.msra.mxu0 0.0
    %130 = vmatprep.subr.mxu0 0.0
    %131 = vmatpush1.msra.mxu0 0.0
    %132 = vmatprep.subr.mxu0 0.0
    %133 = vmatpush1.msra.mxu0 0.0
    %134 = vmatprep.subr.mxu0 0.0
    %135 = vmatpush1.msra.mxu0 0.0
    %136 = vmatprep.subr.mxu0 0.0
    %137 = vmatpush1.msra.mxu0 0.0
    %138 = vmatprep.subr.mxu0 0.0
    %139 = vmatpush1.msra.mxu0 0.0
    %140 = vmatprep.subr.mxu0 0.0
    %141 = vmatpush1.msra.mxu0 0.0
    %142 = vmatprep.subr.mxu0 0.0
    %143 = vmatpush1.msra.mxu0 0.0
    %144 = vmatprep.subr.mxu0 0.0
    %145 = vmatpush1.msra.mxu0 0.0
    %146 = vmatprep.mubr.f32.mxu0 0.0
    %147 = vmatmul.mubr.f32.gmra.mrb[0].mxu0 %v77
    %v148 = vpop.f32.mrb[0].mxu0
    %v149 = vadd.f32 %v73, %v148
    %v150 = vpop.f32.mrb[0].mxu0
    %151 = vmatprep.mubr.f32.mxu0 0.0
    %152 = vmatmul.mubr.f32.gmra.mrb[0].mxu0 %v80
    %v153 = vpop.f32.mrb[0].mxu0
    %v154 = vadd.f32 %v73, %v153
    %v155 = vpop.f32.mrb[0].mxu0
    %156 = vdwg.mxu0
    %v157 = vxor.u32 %v149, 2147483648
    %v158 = vxor.u32 %v154, 2147483648
    %v159 = vmul.f32 %v157, 1.442695
    %v160 = vpow.pop %v159
    %v161 = vmul.f32 %v158, 1.442695
    %v162 = vpow.pop %v161
    %v163 = vadd.f32 %v160, 1.0
    %v164 = vadd.f32 %v162, 1.0
    %v165 = vrcp.pop %v163
    %v166 = vmul.f32 1.0, %v165
    %v167 = vrcp.pop %v164
    %v168 = vmul.f32 1.0, %v167
    %v169 = vmul.f32 %v149, %v166
    %v170 = vmul.f32 %v154, %v168
    %173 = vrot.lane.b32.xlu0 %v149, 96
    %v174 = vpop.permute.xlu0 %173
    %175 = vrot.lane.b32.xlu0 %v154, 96
    %v176 = vpop.permute.xlu0 %175
    %v179 = vmul.f32 %v169, %v174
    %v180 = vmul.f32 %v170, %v176
    %v181 = vld [vmem:[#allocation7] sm:$0xff]
    %v182 = vld [vmem:[#allocation7 + $0x8] sm:$0xff]
    %v183 = vld [vmem:[#allocation7 + $0x10] sm:$0xff]
    %v184 = vld [vmem:[#allocation7 + $0x18] sm:$0xff]
    %v185 = vld [vmem:[%s4] sm:$0x1]
    %v187 = vlaneseq
    %v188 = vshrl.u32 %v187, 7
    %v189 = vsub.s32 0, %v188
    %v190 = vrot.slane %v185, %v189
    %v193 = vsel %vm75, %v179, 0
    %v196 = vsel %vm75, %v180, 0
    %198 = vmatprep.subr.mxu0 0.0
    %199 = vmatpush1.msra.mxu0 %v181
    %200 = vmatprep.subr.mxu0 0.0
    %201 = vmatpush1.msra.mxu0 %v182
    %202 = vmatprep.subr.mxu0 0.0
    %203 = vmatpush1.msra.mxu0 %v183
    %204 = vmatprep.subr.mxu0 0.0
    %205 = vmatpush1.msra.mxu0 %v184
    %206 = vmatprep.subr.mxu0 0.0
    %207 = vmatpush1.msra.mxu0 0.0
    %208 = vmatprep.subr.mxu0 0.0
    %209 = vmatpush1.msra.mxu0 0.0
    %210 = vmatprep.subr.mxu0 0.0
    %211 = vmatpush1.msra.mxu0 0.0
    %212 = vmatprep.subr.mxu0 0.0
    %213 = vmatpush1.msra.mxu0 0.0
    %214 = vmatprep.subr.mxu0 0.0
    %215 = vmatpush1.msra.mxu0 0.0
    %216 = vmatprep.subr.mxu0 0.0
    %217 = vmatpush1.msra.mxu0 0.0
    %218 = vmatprep.subr.mxu0 0.0
    %219 = vmatpush1.msra.mxu0 0.0
    %220 = vmatprep.subr.mxu0 0.0
    %221 = vmatpush1.msra.mxu0 0.0
    %222 = vmatprep.subr.mxu0 0.0
    %223 = vmatpush1.msra.mxu0 0.0
    %224 = vmatprep.subr.mxu0 0.0
    %225 = vmatpush1.msra.mxu0 0.0
    %226 = vmatprep.subr.mxu0 0.0
    %227 = vmatpush1.msra.mxu0 0.0
    %228 = vmatprep.subr.mxu0 0.0
    %229 = vmatpush1.msra.mxu0 0.0
    %230 = vmatprep.subr.mxu0 0.0
    %231 = vmatpush1.msra.mxu0 0.0
    %232 = vmatprep.subr.mxu0 0.0
    %233 = vmatpush1.msra.mxu0 0.0
    %234 = vmatprep.subr.mxu0 0.0
    %235 = vmatpush1.msra.mxu0 0.0
    %236 = vmatprep.subr.mxu0 0.0
    %237 = vmatpush1.msra.mxu0 0.0
    %238 = vmatprep.subr.mxu0 0.0
    %239 = vmatpush1.msra.mxu0 0.0
    %240 = vmatprep.subr.mxu0 0.0
    %241 = vmatpush1.msra.mxu0 0.0
    %242 = vmatprep.subr.mxu0 0.0
    %243 = vmatpush1.msra.mxu0 0.0
    %244 = vmatprep.subr.mxu0 0.0
    %245 = vmatpush1.msra.mxu0 0.0
    %246 = vmatprep.subr.mxu0 0.0
    %247 = vmatpush1.msra.mxu0 0.0
    %248 = vmatprep.subr.mxu0 0.0
    %249 = vmatpush1.msra.mxu0 0.0
    %250 = vmatprep.subr.mxu0 0.0
    %251 = vmatpush1.msra.mxu0 0.0
    %252 = vmatprep.subr.mxu0 0.0
    %253 = vmatpush1.msra.mxu0 0.0
    %254 = vmatprep.subr.mxu0 0.0
    %255 = vmatpush1.msra.mxu0 0.0
    %256 = vmatprep.subr.mxu0 0.0
    %257 = vmatpush1.msra.mxu0 0.0
    %258 = vmatprep.subr.mxu0 0.0
    %259 = vmatpush1.msra.mxu0 0.0
    %260 = vmatprep.subr.mxu0 0.0
    %261 = vmatpush1.msra.mxu0 0.0
    %262 = vmatprep.mubr.f32.mxu0 0.0
    %263 = vmatmul.mubr.f32.gmra.mrb[0].mxu0 %v193
    %v264 = vpop.f32.mrb[0].mxu0
    %v265 = vadd.f32 %v190, %v264
    %v266 = vpop.f32.mrb[0].mxu0
    %267 = vmatprep.mubr.f32.mxu0 0.0
    %268 = vmatmul.mubr.f32.gmra.mrb[0].mxu0 %v196
    %v269 = vpop.f32.mrb[0].mxu0
    %v270 = vadd.f32 %v190, %v269
    %v271 = vpop.f32.mrb[0].mxu0
    %272 = vdwg.mxu0
    %273 = vst.msk [vmem:[#allocation8] sm:$0xff] %vm75, %v265
    %274 = vst.msk [vmem:[#allocation8 + $0x8] sm:$0xff] %vm75, %v270
    // Predicated region
    $region34: #{tpu_custom_call.1} parent=1 // pred_check
      _
    $region35: #{tpu_custom_call.1} parent=1 // pred_check_branch
      %276 = sbr.rel (0) target = $region37
    $region36: #{tpu_custom_call.1} parent=1 // pred_region
      %s278 = ssub.s32 256, 256
      %279 = vsyncadd [#allocation4], %s278
      %s280 = sshll.u32 [#allocation8], 4
      %s281 = int_to_ptr.vmem [resolvable:$true] %s280
      %286 = dma.vmem_to_hbm [thread:$0]  %s281, 256, %s5, [#allocation4], 128, 128, 8
    $region37: #{tpu_custom_call.1} parent=1 // pred_fallthru
      _
    // Predicated region
    $region38: #{tpu_custom_call.1} parent=1 // pred_check
      _
    $region39: #{tpu_custom_call.1} parent=1 // pred_check_branch
      %288 = sbr.rel (0) target = $region41
    $region40: #{tpu_custom_call.1} parent=1 // pred_region
      %289 = dma.done [#allocation4], 256
    $region41: #{tpu_custom_call.1} parent=1 // pred_fallthru
      _
    %290 = vsyncpa [#allocation3], 1
    %291 = vsyncpa [#allocation6], 1
    %292 = vsyncpa [#allocation4], 1

</llo_original>
